<compile_context>
chip_gen: v7x
topology: tpu7x:2x2x1
jax: 0.10.0
libtpu: 0.0.40
codegen_flags: <defaults>
</compile_context>

<pallas_src>
import jax
import jax.numpy as jnp
from jax.experimental import pallas as pl
from jax.experimental.pallas import tpu as pltpu


def _round_up(x: int, m: int) -> int:
    return ((x + m - 1) // m) * m


def _twinq_kernel(xT_ref, w1t_ref, w2t_ref, w3t_ref, bias_ref, out_ref):
    """One batch tile, batch on lanes: [D, TB] -> min(q1, q2) as a [1, TB] row."""
    cd = w1t_ref.dtype                      # compute dtype feeding the MXU

    xT = xT_ref[...]                        # [D, TB], already compute dtype
    # Layer 1, both heads fused on the sublane dim: [2H, D] @ [D, TB].
    h = jnp.dot(w1t_ref[...], xT, preferred_element_type=jnp.float32)
    h = jnp.maximum(h + bias_ref[:, 0:1], 0.0).astype(cd)        # [2H, TB]
    # Layer 2: block-diagonal [2H, 2H] -> one MXU pass serves both heads.
    h = jnp.dot(w2t_ref[...], h, preferred_element_type=jnp.float32)
    h = jnp.maximum(h + bias_ref[:, 1:2], 0.0).astype(cd)        # [2H, TB]
    # Layer 3: [8, 2H] @ [2H, TB]; row 0 = q1, row 1 = q2 (rows 2..7 are pad).
    qt = jnp.dot(w3t_ref[...], h, preferred_element_type=jnp.float32)
    q = qt[0:2, :] + bias_ref[0:2, 2:3]                          # [2, TB]
    out_ref[...] = jnp.minimum(q[0:1, :], q[1:2, :]).astype(out_ref.dtype)


def pack_twinq_params(params, dtype=jnp.float32):
    """Pack the 12 per-head tensors (w:[in,out], b:[1,out]) into 4 fused,
    transposed (batch-on-lanes) operands: W1t [2H,D], W2t [2H,2H],
    W3t [8,2H], bias [2H,3] (cols = b1, b2, b3-in-rows-0/1)."""
    (w1a, b1a, w2a, b2a, w3a, b3a,
     w1b, b1b, w2b, b2b, w3b, b3b) = params
    H = w2a.shape[0]

    # Layer 1 transposed: rows = both heads' hidden units, cols = input feats.
    w1t = jnp.concatenate([w1a.T, w1b.T], axis=0)                # [2H, D]
    # Layer 2 transposed, block-diagonal -> one MXU pass for both heads.
    z = jnp.zeros((H, H), w2a.dtype)
    w2t = jnp.block([[w2a.T, z], [z, w2b.T]])                    # [2H, 2H]
    # Layer 3 transposed, sublane-padded to 8 rows: row 0 = [w3a^T, 0],
    # row 1 = [0, w3b^T].
    w3t = jnp.zeros((8, 2 * H), w3a.dtype)
    w3t = w3t.at[0, :H].set(w3a[:, 0]).at[1, H:].set(w3b[:, 0])
    # All biases folded into a single [2H, 3] slab.
    bias = jnp.zeros((2 * H, 3), jnp.float32)
    bias = bias.at[:, 0].set(jnp.concatenate([b1a[0], b1b[0]]))
    bias = bias.at[:, 1].set(jnp.concatenate([b2a[0], b2b[0]]))
    bias = bias.at[0, 2].set(b3a[0, 0]).at[1, 2].set(b3b[0, 0])

    return tuple(x.astype(dtype) for x in (w1t, w2t, w3t, bias))


def twinq_forward(state, action, packed_params, *, block_b=2048):
    """state: [B, state_dim], action: [B, action_dim] -> [B] = min(q1, q2)."""
    w1t, w2t, w3t, bias = packed_params
    cd = w1t.dtype                            # compute dtype (f32 or bf16)
    B = state.shape[0]
    D = state.shape[1] + action.shape[1]
    assert w1t.shape[1] == D, "packed params do not match state/action dims"

    # Fold concat([state, action], 1) + cast + transpose into wrapper-side XLA:
    # activations reach the kernel as a lane-dense [D, B] slab (batch on lanes).
    saT = jnp.concatenate([state, action], axis=1).astype(cd).T  # [D, B]

    # Batch tile: multiple of 128, capped by block_b; when the batch allows,
    # keep >= 2 tiles so dimension_semantics=("parallel",) can shard across
    # both v7x TensorCores (no effect on single-TC v5e/v6e).
    b128 = _round_up(max(B, 1), 128)
    tb = min(max(128, _round_up(block_b, 128)), b128)
    if b128 >= 256:
        tb = min(tb, _round_up(b128 // 2, 128))
    B_pad = _round_up(b128, tb)
    if B_pad != B:
        saT = jnp.pad(saT, ((0, 0), (0, B_pad - B)))
    n_tiles = B_pad // tb

    out = pl.pallas_call(
        _twinq_kernel,
        out_shape=jax.ShapeDtypeStruct((1, B_pad), jnp.float32),
        grid=(n_tiles,),
        in_specs=[
            # batch-tiled, lane-dense activations
            pl.BlockSpec((D, tb), lambda i: (0, i)),
            # grid-invariant parameters: fetched once, stay VMEM-resident
            pl.BlockSpec(w1t.shape, lambda i: (0, 0)),
            pl.BlockSpec(w2t.shape, lambda i: (0, 0)),
            pl.BlockSpec(w3t.shape, lambda i: (0, 0)),
            pl.BlockSpec(bias.shape, lambda i: (0, 0)),
        ],
        out_specs=pl.BlockSpec((1, tb), lambda i: (0, i)),
        compiler_params=pltpu.CompilerParams(
            dimension_semantics=("parallel",),   # megacore sharding on v7x
            vmem_limit_bytes=32 * 1024 * 1024,   # v5e default is only 16 MiB
        ),
    )(saT, w1t, w2t, w3t, bias)

    return out.reshape(-1)[:B]        # squeeze_output=True in the torch MLP


def init_twinq_params(key, state_dim, action_dim, hidden_dim=32, n_hidden=2):
    """Deterministic init matching torch.nn.Linear's U(-1/sqrt(fan_in), +...)."""
    dims = [state_dim + action_dim] + [hidden_dim] * n_hidden + [1]
    params = []
    for _head in range(2):  # q1, q2
        for i in range(len(dims) - 1):
            fan_in, fan_out = dims[i], dims[i + 1]
            key, kw, kb = jax.random.split(key, 3)
            bound = 1.0 / (fan_in ** 0.5)
            w = jax.random.uniform(kw, (fan_in, fan_out), jnp.float32, -bound, bound)
            b = jax.random.uniform(kb, (1, fan_out), jnp.float32, -bound, bound)
            params.extend([w, b])
    return tuple(params)


def twinq_reference(state, action, params):
    """Pure-JAX reference of the same forward pass (unfused, per head)."""
    sa = jnp.concatenate([state, action], axis=1)
    (w1a, b1a, w2a, b2a, w3a, b3a,
     w1b, b1b, w2b, b2b, w3b, b3b) = params

    def mlp(x, w1, b1, w2, b2, w3, b3):
        h = jnp.maximum(x @ w1 + b1, 0.0)
        h = jnp.maximum(h @ w2 + b2, 0.0)
        return (h @ w3 + b3)[:, 0]

    q1 = mlp(sa, w1a, b1a, w2a, b2a, w3a, b3a)
    q2 = mlp(sa, w1b, b1b, w2b, b2b, w3b, b3b)
    return jnp.minimum(q1, q2)


if __name__ == "__main__":
    key = jax.random.PRNGKey(0)
    batch, state_dim, action_dim, hidden_dim = 8, 24, 8, 32

    key, ks, ka, kp = jax.random.split(key, 4)
    state = jax.random.normal(ks, (batch, state_dim), jnp.float32)
    action = jax.random.normal(ka, (batch, action_dim), jnp.float32)
    raw_params = init_twinq_params(kp, state_dim, action_dim, hidden_dim)

    # f32 path, small batch (single grid step, batch padded to 128).
    packed_f32 = pack_twinq_params(raw_params, dtype=jnp.float32)
    out = jax.block_until_ready(twinq_forward(state, action, packed_f32))
    ref = twinq_reference(state, action, raw_params)
    assert out.shape == (batch,)
    # Tolerance covers MXU default precision / summation reassociation from the
    # fused (merged-W1, block-diag-W2, transposed) formulation.
    assert jnp.allclose(out, ref, atol=2e-3, rtol=2e-3), (out, ref)

    # Multi-tile path: B=300 -> padded batch 512, 2 tiles of 256 (exercises the
    # >=2-tile megacore split and batch padding).
    key, ks2, ka2 = jax.random.split(key, 3)
    batch2 = 300
    state2 = jax.random.normal(ks2, (batch2, state_dim), jnp.float32)
    action2 = jax.random.normal(ka2, (batch2, action_dim), jnp.float32)
    out2 = jax.block_until_ready(twinq_forward(state2, action2, packed_f32))
    ref2 = twinq_reference(state2, action2, raw_params)
    assert out2.shape == (batch2,)
    assert jnp.allclose(out2, ref2, atol=2e-3, rtol=2e-3)

    # bf16 end-to-end path (native bf16 MXU on v6e/v7x, f32 accumulation).
    packed_bf16 = pack_twinq_params(raw_params, dtype=jnp.bfloat16)
    out_bf16 = jax.block_until_ready(twinq_forward(state2, action2, packed_bf16))
    assert out_bf16.shape == (batch2,)
    assert jnp.allclose(out_bf16, ref2, atol=5e-2, rtol=5e-2)

    print("KERNEL_OK")
</pallas_src>

<mosaic_0001>
module attributes {stable_mosaic.version = 11 : i64} {
  func.func @_twinq_kernel(%arg0: i32, %arg1: memref<32x128xf32, #tpu.memory_space<vmem>>, %arg2: memref<64x32xf32, #tpu.memory_space<vmem>>, %arg3: memref<64x64xf32, #tpu.memory_space<vmem>>, %arg4: memref<8x64xf32, #tpu.memory_space<vmem>>, %arg5: memref<64x3xf32, #tpu.memory_space<vmem>>, %arg6: memref<1x128xf32, #tpu.memory_space<vmem>>) attributes {dimension_semantics = [#tpu.dimension_semantics<parallel>], iteration_bounds = array<i64: 1>, scalar_prefetch = 0 : i64, scratch_operands = 0 : i64, tpu.core_type = #tpu.core_type<tc>, window_params = [{transform_indices = @transform_0, window_bounds = array<i64: 32, 128>}, {pipeline_mode = #tpu.pipeline_mode<synchronous>, transform_indices = @transform_1, window_bounds = array<i64: 64, 32>}, {pipeline_mode = #tpu.pipeline_mode<synchronous>, transform_indices = @transform_2, window_bounds = array<i64: 64, 64>}, {pipeline_mode = #tpu.pipeline_mode<synchronous>, transform_indices = @transform_3, window_bounds = array<i64: 8, 64>}, {pipeline_mode = #tpu.pipeline_mode<synchronous>, transform_indices = @transform_4, window_bounds = array<i64: 64, 3>}, {transform_indices = @transform_5, window_bounds = array<i64: 1, 128>}]} {
    %c0 = arith.constant 0 : index
    %c0_0 = arith.constant 0 : index
    %0 = vector.load %arg1[%c0, %c0_0] : memref<32x128xf32, #tpu.memory_space<vmem>>, vector<32x128xf32>
    %c0_1 = arith.constant 0 : index
    %c0_2 = arith.constant 0 : index
    %1 = vector.load %arg2[%c0_1, %c0_2] : memref<64x32xf32, #tpu.memory_space<vmem>>, vector<64x32xf32>
    %cst = arith.constant dense<0.000000e+00> : vector<64x128xf32>
    %2 = tpu.matmul %1, %0, %cst {dimension_numbers = #tpu.dot_dimension_numbers<[1], [0], [0], [1], [0, 0, 1, 1], [], []>} : vector<64x32xf32>, vector<32x128xf32>, vector<64x128xf32> -> vector<64x128xf32>
    %c0_3 = arith.constant 0 : index
    %c0_4 = arith.constant 0 : index
    %3 = vector.load %arg5[%c0_3, %c0_4] : memref<64x3xf32, #tpu.memory_space<vmem>>, vector<64x1xf32>
    %4 = vector.broadcast %3 : vector<64x1xf32> to vector<64x128xf32>
    %5 = arith.addf %2, %4 : vector<64x128xf32>
    %cst_5 = arith.constant 0.000000e+00 : f32
    %6 = vector.broadcast %cst_5 : f32 to vector<64x128xf32>
    %7 = arith.maximumf %5, %6 : vector<64x128xf32>
    %c0_6 = arith.constant 0 : index
    %c0_7 = arith.constant 0 : index
    %8 = vector.load %arg3[%c0_6, %c0_7] : memref<64x64xf32, #tpu.memory_space<vmem>>, vector<64x64xf32>
    %cst_8 = arith.constant dense<0.000000e+00> : vector<64x128xf32>
    %9 = tpu.matmul %8, %7, %cst_8 {dimension_numbers = #tpu.dot_dimension_numbers<[1], [0], [0], [1], [0, 0, 1, 1], [], []>} : vector<64x64xf32>, vector<64x128xf32>, vector<64x128xf32> -> vector<64x128xf32>
    %c0_9 = arith.constant 0 : index
    %c1 = arith.constant 1 : index
    %10 = vector.load %arg5[%c0_9, %c1] : memref<64x3xf32, #tpu.memory_space<vmem>>, vector<64x1xf32>
    %11 = vector.broadcast %10 : vector<64x1xf32> to vector<64x128xf32>
    %12 = arith.addf %9, %11 : vector<64x128xf32>
    %cst_10 = arith.constant 0.000000e+00 : f32
    %13 = vector.broadcast %cst_10 : f32 to vector<64x128xf32>
    %14 = arith.maximumf %12, %13 : vector<64x128xf32>
    %c0_11 = arith.constant 0 : index
    %c0_12 = arith.constant 0 : index
    %15 = vector.load %arg4[%c0_11, %c0_12] : memref<8x64xf32, #tpu.memory_space<vmem>>, vector<8x64xf32>
    %cst_13 = arith.constant dense<0.000000e+00> : vector<8x128xf32>
    %16 = tpu.matmul %15, %14, %cst_13 {dimension_numbers = #tpu.dot_dimension_numbers<[1], [0], [0], [1], [0, 0, 1, 1], [], []>} : vector<8x64xf32>, vector<64x128xf32>, vector<8x128xf32> -> vector<8x128xf32>
    %17 = vector.extract_strided_slice %16 {offsets = [0, 0], sizes = [2, 128], strides = [1, 1]} : vector<8x128xf32> to vector<2x128xf32>
    %c0_14 = arith.constant 0 : index
    %c2 = arith.constant 2 : index
    %18 = vector.load %arg5[%c0_14, %c2] : memref<64x3xf32, #tpu.memory_space<vmem>>, vector<2x1xf32>
    %19 = vector.broadcast %18 : vector<2x1xf32> to vector<2x128xf32>
    %20 = arith.addf %17, %19 : vector<2x128xf32>
    %21 = vector.extract_strided_slice %20 {offsets = [0, 0], sizes = [1, 128], strides = [1, 1]} : vector<2x128xf32> to vector<1x128xf32>
    %22 = vector.extract_strided_slice %20 {offsets = [1, 0], sizes = [1, 128], strides = [1, 1]} : vector<2x128xf32> to vector<1x128xf32>
    %23 = arith.minimumf %21, %22 : vector<1x128xf32>
    %c0_15 = arith.constant 0 : index
    %c0_16 = arith.constant 0 : index
    %24 = vector.load %arg6[%c0_15, %c0_16] : memref<1x128xf32, #tpu.memory_space<vmem>>, vector<1x128xf32>
    tpu.vector_store %arg6[%c0_15, %c0_16], %23 {strides = array<i32>} : memref<1x128xf32, #tpu.memory_space<vmem>>, vector<1x128xf32>,
    return
  }
  func.func @transform_0(%arg0: i32) -> (i32, i32) {
    %c0_i32 = arith.constant 0 : i32
    %c0_i32_0 = arith.constant 0 : i32
    return %c0_i32, %arg0 : i32, i32
  }
  func.func @transform_1(%arg0: i32) -> (i32, i32) {
    %c0_i32 = arith.constant 0 : i32
    %c0_i32_0 = arith.constant 0 : i32
    %c0_i32_1 = arith.constant 0 : i32
    return %c0_i32, %c0_i32_0 : i32, i32
  }
  func.func @transform_2(%arg0: i32) -> (i32, i32) {
    %c0_i32 = arith.constant 0 : i32
    %c0_i32_0 = arith.constant 0 : i32
    %c0_i32_1 = arith.constant 0 : i32
    return %c0_i32, %c0_i32_0 : i32, i32
  }
  func.func @transform_3(%arg0: i32) -> (i32, i32) {
    %c0_i32 = arith.constant 0 : i32
    %c0_i32_0 = arith.constant 0 : i32
    %c0_i32_1 = arith.constant 0 : i32
    return %c0_i32, %c0_i32_0 : i32, i32
  }
  func.func @transform_4(%arg0: i32) -> (i32, i32) {
    %c0_i32 = arith.constant 0 : i32
    %c0_i32_0 = arith.constant 0 : i32
    %c0_i32_1 = arith.constant 0 : i32
    return %c0_i32, %c0_i32_0 : i32, i32
  }
  func.func @transform_5(%arg0: i32) -> (i32, i32) {
    %c0_i32 = arith.constant 0 : i32
    %c0_i32_0 = arith.constant 0 : i32
    return %c0_i32, %arg0 : i32, i32
  }
}

</mosaic_0001>

<llo_original>
// kernel: tpu_custom_call.1
$region0: #{tpu_custom_call.1}
  #allocation0 [shape = 'u32[]', space=smem, size = 0x4, offset = 0x4, fixed_abs, tag = 'smem constant byte address 0x4 - core index']
  #allocation1 [shape = 'u32[144,128]{1,0:T(1,128)}', space=vmem, size = 0x12000, scoped, tag = 'internal scratch']
  %s0 = inlined_call_operand.vmem [shape: f32[32,128], index: 0, kind: input, shape index: {}]
  %s1 = inlined_call_operand.vmem [shape: f32[64,32], index: 1, kind: input, shape index: {}]
  %s2 = inlined_call_operand.vmem [shape: f32[64,64], index: 2, kind: input, shape index: {}]
  %s3 = inlined_call_operand.vmem [shape: f32[8,64], index: 3, kind: input, shape index: {}]
  %s4 = inlined_call_operand.vmem [shape: f32[64,3], index: 4, kind: input, shape index: {}]
  %s5 = inlined_call_operand.hbm [shape: f32[1,128], index: 5, kind: output, shape index: {}]
  %s6 = sld [smem:[#allocation0]]
  $region30: #{tpu_custom_call.1} parent=0
    _
  %s8 = ssub.s32 1, %s6
  %s9 = scalar_select 0, %s8, %s6
  $region1: #{tpu_custom_call.1} parent=0
    #allocation2 [shape = 'u8[512]{0}', space=vmem, size = 0x400, scoped, tag = 'output window, operand 0, single buffered']
    #allocation3 [shape = 's32[1]{0}', space=sflag, size = 0x4, scoped, tag = 'scoped memory for tpu_custom_call.1']
    %10 = vsyncpa [#allocation3], 0
    // Predicated region
    $region2: #{tpu_custom_call.1} parent=1 // pred_check
      _
    $region3: #{tpu_custom_call.1} parent=1 // pred_check_branch
      %12 = sbr.rel (0) target = $region5
    $region4: #{tpu_custom_call.1} parent=1 // pred_region
      _
    $region5: #{tpu_custom_call.1} parent=1 // pred_fallthru
      _
    // Predicated region
    $region6: #{tpu_custom_call.1} parent=1 // pred_check
      _
    $region7: #{tpu_custom_call.1} parent=1 // pred_check_branch
      %14 = sbr.rel (0) target = $region9
    $region8: #{tpu_custom_call.1} parent=1 // pred_region
      _
    $region9: #{tpu_custom_call.1} parent=1 // pred_fallthru
      _
    // Predicated region
    $region10: #{tpu_custom_call.1} parent=1 // pred_check
      _
    $region11: #{tpu_custom_call.1} parent=1 // pred_check_branch
      %16 = sbr.rel (0) target = $region13
    $region12: #{tpu_custom_call.1} parent=1 // pred_region
      _
    $region13: #{tpu_custom_call.1} parent=1 // pred_fallthru
      _
    // Predicated region
    $region14: #{tpu_custom_call.1} parent=1 // pred_check
      _
    $region15: #{tpu_custom_call.1} parent=1 // pred_check_branch
      %18 = sbr.rel (0) target = $region17
    $region16: #{tpu_custom_call.1} parent=1 // pred_region
      _
    $region17: #{tpu_custom_call.1} parent=1 // pred_fallthru
      _
    // Predicated region
    $region18: #{tpu_custom_call.1} parent=1 // pred_check
      _
    $region19: #{tpu_custom_call.1} parent=1 // pred_check_branch
      %20 = sbr.rel (0) target = $region21
    $region20: #{tpu_custom_call.1} parent=1 // pred_region
      _
    $region21: #{tpu_custom_call.1} parent=1 // pred_fallthru
      _
    %v21 = vld [vmem:[%s0] sm:$0xff]
    %v22 = vld [vmem:[%s0 + $0x8] sm:$0xff]
    %v23 = vld [vmem:[%s0 + $0x10] sm:$0xff]
    %v24 = vld [vmem:[%s0 + $0x18] sm:$0xff]
    %v25 = vld [vmem:[%s1] sm:$0xff]
    %v26 = vld [vmem:[%s1 + $0x8] sm:$0xff]
    %v27 = vld [vmem:[%s1 + $0x10] sm:$0xff]
    %v28 = vld [vmem:[%s1 + $0x18] sm:$0xff]
    %v29 = vld [vmem:[%s1 + $0x20] sm:$0xff]
    %v30 = vld [vmem:[%s1 + $0x28] sm:$0xff]
    %v31 = vld [vmem:[%s1 + $0x30] sm:$0xff]
    %v32 = vld [vmem:[%s1 + $0x38] sm:$0xff]
    %v33 = vld [vmem:[%s4] sm:$0xff]
    %v34 = vld [vmem:[%s4 + $0x8] sm:$0xff]
    %v35 = vld [vmem:[%s4 + $0x10] sm:$0xff]
    %v36 = vld [vmem:[%s4 + $0x18] sm:$0xff]
    %v37 = vld [vmem:[%s4 + $0x20] sm:$0xff]
    %v38 = vld [vmem:[%s4 + $0x28] sm:$0xff]
    %v39 = vld [vmem:[%s4 + $0x30] sm:$0xff]
    %v40 = vld [vmem:[%s4 + $0x38] sm:$0xff]
    %42 = vset.pattern.permute.xlu0 0
    %43 = vperm.xlu0 %42, %v33
    %v44 = vpop.permute.xlu0 %43
    %47 = vset.pattern.permute.xlu0 0
    %48 = vperm.xlu0 %47, %v34
    %v49 = vpop.permute.xlu0 %48
    %52 = vset.pattern.permute.xlu0 0
    %53 = vperm.xlu0 %52, %v35
    %v54 = vpop.permute.xlu0 %53
    %57 = vset.pattern.permute.xlu0 0
    %58 = vperm.xlu0 %57, %v36
    %v59 = vpop.permute.xlu0 %58
    %62 = vset.pattern.permute.xlu0 0
    %63 = vperm.xlu0 %62, %v37
    %v64 = vpop.permute.xlu0 %63
    %67 = vset.pattern.permute.xlu0 0
    %68 = vperm.xlu0 %67, %v38
    %v69 = vpop.permute.xlu0 %68
    %72 = vset.pattern.permute.xlu0 0
    %73 = vperm.xlu0 %72, %v39
    %v74 = vpop.permute.xlu0 %73
    %77 = vset.pattern.permute.xlu0 0
    %78 = vperm.xlu0 %77, %v40
    %v79 = vpop.permute.xlu0 %78
    %vm81 = vcmask 261120
    %v83 = vsel %vm81, %v25, 0
    %v86 = vsel %vm81, %v26, 0
    %v89 = vsel %vm81, %v27, 0
    %v92 = vsel %vm81, %v28, 0
    %v95 = vsel %vm81, %v29, 0
    %v98 = vsel %vm81, %v30, 0
    %v101 = vsel %vm81, %v31, 0
    %v104 = vsel %vm81, %v32, 0
    %106 = vmatprep.subr.mxu0 0.0
    %107 = vmatpush1.msra.mxu0 %v21
    %108 = vmatprep.subr.mxu0 0.0
    %109 = vmatpush1.msra.mxu0 %v22
    %110 = vmatprep.subr.mxu0 0.0
    %111 = vmatpush1.msra.mxu0 %v23
    %112 = vmatprep.subr.mxu0 0.0
    %113 = vmatpush1.msra.mxu0 %v24
    %114 = vmatprep.subr.mxu0 0.0
    %115 = vmatpush1.msra.mxu0 0.0
    %116 = vmatprep.subr.mxu0 0.0
    %117 = vmatpush1.msra.mxu0 0.0
    %118 = vmatprep.subr.mxu0 0.0
    %119 = vmatpush1.msra.mxu0 0.0
    %120 = vmatprep.subr.mxu0 0.0
    %121 = vmatpush1.msra.mxu0 0.0
    %122 = vmatprep.subr.mxu0 0.0
    %123 = vmatpush1.msra.mxu0 0.0
    %124 = vmatprep.subr.mxu0 0.0
    %125 = vmatpush1.msra.mxu0 0.0
    %126 = vmatprep.subr.mxu0 0.0
    %127 = vmatpush1.msra.mxu0 0.0
    %128 = vmatprep.subr.mxu0 0.0
    %129 = vmatpush1.msra.mxu0 0.0
    %130 = vmatprep.subr.mxu0 0.0
    %131 = vmatpush1.msra.mxu0 0.0
    %132 = vmatprep.subr.mxu0 0.0
    %133 = vmatpush1.msra.mxu0 0.0
    %134 = vmatprep.subr.mxu0 0.0
    %135 = vmatpush1.msra.mxu0 0.0
    %136 = vmatprep.subr.mxu0 0.0
    %137 = vmatpush1.msra.mxu0 0.0
    %138 = vmatprep.subr.mxu0 0.0
    %139 = vmatpush1.msra.mxu0 0.0
    %140 = vmatprep.subr.mxu0 0.0
    %141 = vmatpush1.msra.mxu0 0.0
    %142 = vmatprep.subr.mxu0 0.0
    %143 = vmatpush1.msra.mxu0 0.0
    %144 = vmatprep.subr.mxu0 0.0
    %145 = vmatpush1.msra.mxu0 0.0
    %146 = vmatprep.subr.mxu0 0.0
    %147 = vmatpush1.msra.mxu0 0.0
    %148 = vmatprep.subr.mxu0 0.0
    %149 = vmatpush1.msra.mxu0 0.0
    %150 = vmatprep.subr.mxu0 0.0
    %151 = vmatpush1.msra.mxu0 0.0
    %152 = vmatprep.subr.mxu0 0.0
    %153 = vmatpush1.msra.mxu0 0.0
    %154 = vmatprep.subr.mxu0 0.0
    %155 = vmatpush1.msra.mxu0 0.0
    %156 = vmatprep.subr.mxu0 0.0
    %157 = vmatpush1.msra.mxu0 0.0
    %158 = vmatprep.subr.mxu0 0.0
    %159 = vmatpush1.msra.mxu0 0.0
    %160 = vmatprep.subr.mxu0 0.0
    %161 = vmatpush1.msra.mxu0 0.0
    %162 = vmatprep.subr.mxu0 0.0
    %163 = vmatpush1.msra.mxu0 0.0
    %164 = vmatprep.subr.mxu0 0.0
    %165 = vmatpush1.msra.mxu0 0.0
    %166 = vmatprep.subr.mxu0 0.0
    %167 = vmatpush1.msra.mxu0 0.0
    %168 = vmatprep.subr.mxu0 0.0
    %169 = vmatpush1.msra.mxu0 0.0
    %170 = vmatprep.mubr.f32.mxu0 0.0
    %171 = vmatmul.mubr.f32.gmra.mrb[0].mxu0 %v83
    %v172 = vpop.f32.mrb[0].mxu0
    %v173 = vadd.f32 %v44, %v172
    %v174 = vpop.f32.mrb[0].mxu0
    %175 = vmatprep.mubr.f32.mxu0 0.0
    %176 = vmatmul.mubr.f32.gmra.mrb[0].mxu0 %v86
    %v177 = vpop.f32.mrb[0].mxu0
    %v178 = vadd.f32 %v49, %v177
    %v179 = vpop.f32.mrb[0].mxu0
    %180 = vmatprep.mubr.f32.mxu0 0.0
    %181 = vmatmul.mubr.f32.gmra.mrb[0].mxu0 %v89
    %v182 = vpop.f32.mrb[0].mxu0
    %v183 = vadd.f32 %v54, %v182
    %v184 = vpop.f32.mrb[0].mxu0
    %185 = vmatprep.mubr.f32.mxu0 0.0
    %186 = vmatmul.mubr.f32.gmra.mrb[0].mxu0 %v92
    %v187 = vpop.f32.mrb[0].mxu0
    %v188 = vadd.f32 %v59, %v187
    %v189 = vpop.f32.mrb[0].mxu0
    %190 = vmatprep.mubr.f32.mxu0 0.0
    %191 = vmatmul.mubr.f32.gmra.mrb[0].mxu0 %v95
    %v192 = vpop.f32.mrb[0].mxu0
    %v193 = vadd.f32 %v64, %v192
    %v194 = vpop.f32.mrb[0].mxu0
    %195 = vmatprep.mubr.f32.mxu0 0.0
    %196 = vmatmul.mubr.f32.gmra.mrb[0].mxu0 %v98
    %v197 = vpop.f32.mrb[0].mxu0
    %v198 = vadd.f32 %v69, %v197
    %v199 = vpop.f32.mrb[0].mxu0
    %200 = vmatprep.mubr.f32.mxu0 0.0
    %201 = vmatmul.mubr.f32.gmra.mrb[0].mxu0 %v101
    %v202 = vpop.f32.mrb[0].mxu0
    %v203 = vadd.f32 %v74, %v202
    %v204 = vpop.f32.mrb[0].mxu0
    %205 = vmatprep.mubr.f32.mxu0 0.0
    %206 = vmatmul.mubr.f32.gmra.mrb[0].mxu0 %v104
    %v207 = vpop.f32.mrb[0].mxu0
    %v208 = vadd.f32 %v79, %v207
    %v209 = vpop.f32.mrb[0].mxu0
    %210 = vdwg.mxu0
    %v211 = vmax.f32 %v173, 0.0
    %v212 = vmax.f32 %v178, 0.0
    %v213 = vmax.f32 %v183, 0.0
    %v214 = vmax.f32 %v188, 0.0
    %v215 = vmax.f32 %v193, 0.0
    %v216 = vmax.f32 %v198, 0.0
    %v217 = vmax.f32 %v203, 0.0
    %v218 = vmax.f32 %v208, 0.0
    %v219 = vld [vmem:[%s2] sm:$0xff]
    %v220 = vld [vmem:[%s2 + $0x8] sm:$0xff]
    %v221 = vld [vmem:[%s2 + $0x10] sm:$0xff]
    %v222 = vld [vmem:[%s2 + $0x18] sm:$0xff]
    %v223 = vld [vmem:[%s2 + $0x20] sm:$0xff]
    %v224 = vld [vmem:[%s2 + $0x28] sm:$0xff]
    %v225 = vld [vmem:[%s2 + $0x30] sm:$0xff]
    %v226 = vld [vmem:[%s2 + $0x38] sm:$0xff]
    %227 = vset.pattern.permute.xlu0 1
    %228 = vperm.xlu0 %227, %v33
    %v229 = vpop.permute.xlu0 %228
    %231 = vset.pattern.permute.xlu0 1
    %232 = vperm.xlu0 %231, %v34
    %v233 = vpop.permute.xlu0 %232
    %235 = vset.pattern.permute.xlu0 1
    %236 = vperm.xlu0 %235, %v35
    %v237 = vpop.permute.xlu0 %236
    %239 = vset.pattern.permute.xlu0 1
    %240 = vperm.xlu0 %239, %v36
    %v241 = vpop.permute.xlu0 %240
    %243 = vset.pattern.permute.xlu0 1
    %244 = vperm.xlu0 %243, %v37
    %v245 = vpop.permute.xlu0 %244
    %247 = vset.pattern.permute.xlu0 1
    %248 = vperm.xlu0 %247, %v38
    %v249 = vpop.permute.xlu0 %248
    %251 = vset.pattern.permute.xlu0 1
    %252 = vperm.xlu0 %251, %v39
    %v253 = vpop.permute.xlu0 %252
    %255 = vset.pattern.permute.xlu0 1
    %256 = vperm.xlu0 %255, %v40
    %v257 = vpop.permute.xlu0 %256
    %vm259 = vcmask 523264
    %v261 = vsel %vm259, %v219, 0
    %v264 = vsel %vm259, %v220, 0
    %v267 = vsel %vm259, %v221, 0
    %v270 = vsel %vm259, %v222, 0
    %v273 = vsel %vm259, %v223, 0
    %v276 = vsel %vm259, %v224, 0
    %v279 = vsel %vm259, %v225, 0
    %v282 = vsel %vm259, %v226, 0
    %284 = vmatprep.subr.mxu0 0.0
    %285 = vmatpush1.msra.mxu0 %v211
    %286 = vmatprep.subr.mxu0 0.0
    %287 = vmatpush1.msra.mxu0 %v212
    %288 = vmatprep.subr.mxu0 0.0
    %289 = vmatpush1.msra.mxu0 %v213
    %290 = vmatprep.subr.mxu0 0.0
    %291 = vmatpush1.msra.mxu0 %v214
    %292 = vmatprep.subr.mxu0 0.0
    %293 = vmatpush1.msra.mxu0 %v215
    %294 = vmatprep.subr.mxu0 0.0
    %295 = vmatpush1.msra.mxu0 %v216
    %296 = vmatprep.subr.mxu0 0.0
    %297 = vmatpush1.msra.mxu0 %v217
    %298 = vmatprep.subr.mxu0 0.0
    %299 = vmatpush1.msra.mxu0 %v218
    %300 = vmatprep.subr.mxu0 0.0
    %301 = vmatpush1.msra.mxu0 0.0
    %302 = vmatprep.subr.mxu0 0.0
    %303 = vmatpush1.msra.mxu0 0.0
    %304 = vmatprep.subr.mxu0 0.0
    %305 = vmatpush1.msra.mxu0 0.0
    %306 = vmatprep.subr.mxu0 0.0
    %307 = vmatpush1.msra.mxu0 0.0
    %308 = vmatprep.subr.mxu0 0.0
    %309 = vmatpush1.msra.mxu0 0.0
    %310 = vmatprep.subr.mxu0 0.0
    %311 = vmatpush1.msra.mxu0 0.0
    %312 = vmatprep.subr.mxu0 0.0
    %313 = vmatpush1.msra.mxu0 0.0
    %314 = vmatprep.subr.mxu0 0.0
    %315 = vmatpush1.msra.mxu0 0.0
    %316 = vmatprep.subr.mxu0 0.0
    %317 = vmatpush1.msra.mxu0 0.0
    %318 = vmatprep.subr.mxu0 0.0
    %319 = vmatpush1.msra.mxu0 0.0
    %320 = vmatprep.subr.mxu0 0.0
    %321 = vmatpush1.msra.mxu0 0.0
    %322 = vmatprep.subr.mxu0 0.0
    %323 = vmatpush1.msra.mxu0 0.0
    %324 = vmatprep.subr.mxu0 0.0
    %325 = vmatpush1.msra.mxu0 0.0
    %326 = vmatprep.subr.mxu0 0.0
    %327 = vmatpush1.msra.mxu0 0.0
    %328 = vmatprep.subr.mxu0 0.0
    %329 = vmatpush1.msra.mxu0 0.0
    %330 = vmatprep.subr.mxu0 0.0
    %331 = vmatpush1.msra.mxu0 0.0
    %332 = vmatprep.subr.mxu0 0.0
    %333 = vmatpush1.msra.mxu0 0.0
    %334 = vmatprep.subr.mxu0 0.0
    %335 = vmatpush1.msra.mxu0 0.0
    %336 = vmatprep.subr.mxu0 0.0
    %337 = vmatpush1.msra.mxu0 0.0
    %338 = vmatprep.subr.mxu0 0.0
    %339 = vmatpush1.msra.mxu0 0.0
    %340 = vmatprep.subr.mxu0 0.0
    %341 = vmatpush1.msra.mxu0 0.0
    %342 = vmatprep.subr.mxu0 0.0
    %343 = vmatpush1.msra.mxu0 0.0
    %344 = vmatprep.subr.mxu0 0.0
    %345 = vmatpush1.msra.mxu0 0.0
    %346 = vmatprep.subr.mxu0 0.0
    %347 = vmatpush1.msra.mxu0 0.0
    %348 = vmatprep.mubr.f32.mxu0 0.0
    %349 = vmatmul.mubr.f32.gmra.mrb[0].mxu0 %v261
    %v350 = vpop.f32.mrb[0].mxu0
    %v351 = vadd.f32 %v229, %v350
    %v352 = vpop.f32.mrb[0].mxu0
    %353 = vmatprep.mubr.f32.mxu0 0.0
    %354 = vmatmul.mubr.f32.gmra.mrb[0].mxu0 %v264
    %v355 = vpop.f32.mrb[0].mxu0
    %v356 = vadd.f32 %v233, %v355
    %v357 = vpop.f32.mrb[0].mxu0
    %358 = vmatprep.mubr.f32.mxu0 0.0
    %359 = vmatmul.mubr.f32.gmra.mrb[0].mxu0 %v267
    %v360 = vpop.f32.mrb[0].mxu0
    %v361 = vadd.f32 %v237, %v360
    %v362 = vpop.f32.mrb[0].mxu0
    %363 = vmatprep.mubr.f32.mxu0 0.0
    %364 = vmatmul.mubr.f32.gmra.mrb[0].mxu0 %v270
    %v365 = vpop.f32.mrb[0].mxu0
    %v366 = vadd.f32 %v241, %v365
    %v367 = vpop.f32.mrb[0].mxu0
    %368 = vmatprep.mubr.f32.mxu0 0.0
    %369 = vmatmul.mubr.f32.gmra.mrb[0].mxu0 %v273
    %v370 = vpop.f32.mrb[0].mxu0
    %v371 = vadd.f32 %v245, %v370
    %v372 = vpop.f32.mrb[0].mxu0
    %373 = vmatprep.mubr.f32.mxu0 0.0
    %374 = vmatmul.mubr.f32.gmra.mrb[0].mxu0 %v276
    %v375 = vpop.f32.mrb[0].mxu0
    %v376 = vadd.f32 %v249, %v375
    %v377 = vpop.f32.mrb[0].mxu0
    %378 = vmatprep.mubr.f32.mxu0 0.0
    %379 = vmatmul.mubr.f32.gmra.mrb[0].mxu0 %v279
    %v380 = vpop.f32.mrb[0].mxu0
    %v381 = vadd.f32 %v253, %v380
    %v382 = vpop.f32.mrb[0].mxu0
    %383 = vmatprep.mubr.f32.mxu0 0.0
    %384 = vmatmul.mubr.f32.gmra.mrb[0].mxu0 %v282
    %v385 = vpop.f32.mrb[0].mxu0
    %v386 = vadd.f32 %v257, %v385
    %v387 = vpop.f32.mrb[0].mxu0
    %388 = vdwg.mxu0
    %v389 = vmax.f32 %v351, 0.0
    %v390 = vmax.f32 %v356, 0.0
    %v391 = vmax.f32 %v361, 0.0
    %v392 = vmax.f32 %v366, 0.0
    %v393 = vmax.f32 %v371, 0.0
    %v394 = vmax.f32 %v376, 0.0
    %v395 = vmax.f32 %v381, 0.0
    %v396 = vmax.f32 %v386, 0.0
    %v397 = vld [vmem:[%s3] sm:$0xff]
    %v399 = vsel %vm259, %v397, 0
    %401 = vmatprep.subr.mxu0 0.0
    %402 = vmatpush1.msra.mxu0 %v389
    %403 = vmatprep.subr.mxu0 0.0
    %404 = vmatpush1.msra.mxu0 %v390
    %405 = vmatprep.subr.mxu0 0.0
    %406 = vmatpush1.msra.mxu0 %v391
    %407 = vmatprep.subr.mxu0 0.0
    %408 = vmatpush1.msra.mxu0 %v392
    %409 = vmatprep.subr.mxu0 0.0
    %410 = vmatpush1.msra.mxu0 %v393
    %411 = vmatprep.subr.mxu0 0.0
    %412 = vmatpush1.msra.mxu0 %v394
    %413 = vmatprep.subr.mxu0 0.0
    %414 = vmatpush1.msra.mxu0 %v395
    %415 = vmatprep.subr.mxu0 0.0
    %416 = vmatpush1.msra.mxu0 %v396
    %417 = vmatprep.subr.mxu0 0.0
    %418 = vmatpush1.msra.mxu0 0.0
    %419 = vmatprep.subr.mxu0 0.0
    %420 = vmatpush1.msra.mxu0 0.0
    %421 = vmatprep.subr.mxu0 0.0
    %422 = vmatpush1.msra.mxu0 0.0
    %423 = vmatprep.subr.mxu0 0.0
    %424 = vmatpush1.msra.mxu0 0.0
    %425 = vmatprep.subr.mxu0 0.0
    %426 = vmatpush1.msra.mxu0 0.0
    %427 = vmatprep.subr.mxu0 0.0
    %428 = vmatpush1.msra.mxu0 0.0
    %429 = vmatprep.subr.mxu0 0.0
    %430 = vmatpush1.msra.mxu0 0.0
    %431 = vmatprep.subr.mxu0 0.0
    %432 = vmatpush1.msra.mxu0 0.0
    %433 = vmatprep.subr.mxu0 0.0
    %434 = vmatpush1.msra.mxu0 0.0
    %435 = vmatprep.subr.mxu0 0.0
    %436 = vmatpush1.msra.mxu0 0.0
    %437 = vmatprep.subr.mxu0 0.0
    %438 = vmatpush1.msra.mxu0 0.0
    %439 = vmatprep.subr.mxu0 0.0
    %440 = vmatpush1.msra.mxu0 0.0
    %441 = vmatprep.subr.mxu0 0.0
    %442 = vmatpush1.msra.mxu0 0.0
    %443 = vmatprep.subr.mxu0 0.0
    %444 = vmatpush1.msra.mxu0 0.0
    %445 = vmatprep.subr.mxu0 0.0
    %446 = vmatpush1.msra.mxu0 0.0
    %447 = vmatprep.subr.mxu0 0.0
    %448 = vmatpush1.msra.mxu0 0.0
    %449 = vmatprep.subr.mxu0 0.0
    %450 = vmatpush1.msra.mxu0 0.0
    %451 = vmatprep.subr.mxu0 0.0
    %452 = vmatpush1.msra.mxu0 0.0
    %453 = vmatprep.subr.mxu0 0.0
    %454 = vmatpush1.msra.mxu0 0.0
    %455 = vmatprep.subr.mxu0 0.0
    %456 = vmatpush1.msra.mxu0 0.0
    %457 = vmatprep.subr.mxu0 0.0
    %458 = vmatpush1.msra.mxu0 0.0
    %459 = vmatprep.subr.mxu0 0.0
    %460 = vmatpush1.msra.mxu0 0.0
    %461 = vmatprep.subr.mxu0 0.0
    %462 = vmatpush1.msra.mxu0 0.0
    %463 = vmatprep.subr.mxu0 0.0
    %464 = vmatpush1.msra.mxu0 0.0
    %465 = vmatprep.mubr.f32.mxu0 0.0
    %466 = vmatmul.mubr.f32.gmra.mrb[0].mxu0 %v399
    %v467 = vpop.f32.mrb[0].mxu0
    %v468 = vadd.f32 0.0, %v467
    %v469 = vpop.f32.mrb[0].mxu0
    %470 = vdwg.mxu0
    %v471 = vld [vmem:[%s4] sm:$0x3]
    %473 = vset.pattern.permute.xlu0 2
    %474 = vperm.xlu0 %473, %v471
    %v475 = vpop.permute.xlu0 %474
    %v477 = vadd.f32 %v468, %v475
    %v479 = vrot.slane %v477, 1
    %v481 = vmin.f32 %v477, %v479
    %482 = vst [vmem:[#allocation2] sm:$0x1] %v481
    // Predicated region
    $region22: #{tpu_custom_call.1} parent=1 // pred_check
      _
    $region23: #{tpu_custom_call.1} parent=1 // pred_check_branch
      %484 = sbr.rel (0) target = $region25
    $region24: #{tpu_custom_call.1} parent=1 // pred_region
      %s486 = ssub.s32 16, 16
      %487 = vsyncadd [#allocation3], %s486
      %s489 = sshll.u32 [#allocation2], 4
      %s490 = int_to_ptr.vmem [resolvable:$true] %s489
      %492 = dma.vmem_to_hbm [thread:$0]  %s490, 16, %s5, [#allocation3]
    $region25: #{tpu_custom_call.1} parent=1 // pred_fallthru
      _
    // Predicated region
    $region26: #{tpu_custom_call.1} parent=1 // pred_check
      _
    $region27: #{tpu_custom_call.1} parent=1 // pred_check_branch
      %494 = sbr.rel (0) target = $region29
    $region28: #{tpu_custom_call.1} parent=1 // pred_region
      %495 = dma.done [#allocation3], 16
    $region29: #{tpu_custom_call.1} parent=1 // pred_fallthru
      _
    %496 = vsyncpa [#allocation3], 1

</llo_original>
